<compile_context>
chip_gen: v6e
topology: v6e:2x2x1
jax: 0.10.0
libtpu: 0.0.40
codegen_flags: <defaults>
</compile_context>

<pallas_src>
import functools

import jax
import jax.numpy as jnp
from jax.experimental import pallas as pl
from jax.experimental.pallas import tpu as pltpu


# ---------------------------------------------------------------------------
# Kernel
# ---------------------------------------------------------------------------
def _channel_attention_gate_kernel(hw_total, hw_t, lane_w, needs_mask,
                                   x_ref, w1t_ref, b1_ref, w2t_ref, b2_ref,
                                   gate_ref, sum_sc, max_sc):
    """Grid: (B // bt, cdiv(HW, hw_t)).

    Streams (bt, C, hw_t) slabs of x and keeps lane-width-`lane_w` running
    sum / max accumulators in VMEM (hot loop: vld + VALU only).  The finalize
    (last HW step) does one cross-lane reduce, fuses both shared-MLP passes
    into a single pair of matmuls, and writes only the (bt, C) sigmoid gate.
    """
    hw_i = pl.program_id(1)

    @pl.when(hw_i == 0)
    def _init():
        sum_sc[...] = jnp.zeros_like(sum_sc)
        max_sc[...] = jnp.full_like(max_sc, -jnp.inf)

    n_slices = hw_t // lane_w
    bt = sum_sc.shape[0]

    if needs_mask:
        # The last HW block of the cdiv grid reads past HW; that tail is
        # garbage, so mask it out of both the sum and the max.
        lane_iota = jax.lax.broadcasted_iota(jnp.int32, (1, 1, lane_w), 2)
        remaining = hw_total - hw_i * hw_t     # valid lanes in this block

    # Accumulate this block's contribution in registers (pure VALU), then do
    # a single read-modify-write of the VMEM accumulators.
    s_part = None
    m_part = None
    for j in range(n_slices):
        c = x_ref[:, :, pl.ds(j * lane_w, lane_w)].astype(jnp.float32)
        if needs_mask:
            valid = (lane_iota + (j * lane_w)) < remaining
            c_sum = jnp.where(valid, c, 0.0)
            c_max = jnp.where(valid, c, -jnp.inf)
        else:
            c_sum = c
            c_max = c
        s_part = c_sum if s_part is None else s_part + c_sum
        m_part = c_max if m_part is None else jnp.maximum(m_part, c_max)

    sum_sc[...] += s_part
    max_sc[...] = jnp.maximum(max_sc[...], m_part)

    @pl.when(hw_i == pl.num_programs(1) - 1)
    def _finalize():
        # Single cross-lane (XLU) reduce per batch tile.
        avg_pool = jnp.sum(sum_sc[...], axis=-1) * (1.0 / hw_total)   # (bt, C)
        max_pool = jnp.max(max_sc[...], axis=-1)                      # (bt, C)

        # Fuse the two shared-MLP passes: stack pooled vectors along the
        # sublane axis -> each FC layer is one matmul; weights come in
        # pre-transposed so there are no in-kernel transposes.
        pools = jnp.concatenate([avg_pool, max_pool], axis=0)         # (2bt, C)
        h = jnp.dot(pools, w1t_ref[...],
                    preferred_element_type=jnp.float32) + b1_ref[...]
        h = jnp.maximum(h, 0.0)                                       # ReLU
        o = jnp.dot(h, w2t_ref[...],
                    preferred_element_type=jnp.float32) + b2_ref[...]  # (2bt, C)

        gate = jax.nn.sigmoid(o[:bt] + o[bt:])                        # (bt, C)
        gate_ref[...] = gate.astype(gate_ref.dtype)


# ---------------------------------------------------------------------------
# Wrapper
# ---------------------------------------------------------------------------
def _num_tensorcores_per_chip():
    """Best-effort TensorCore count (v7x-class chips expose 2 per chip)."""
    try:
        kind = (jax.devices()[0].device_kind or "").lower()
    except Exception:
        return 1
    return 2 if "7" in kind else 1


def _pick_batch_tile(batch, cap, num_tc):
    """Largest divisor of `batch` <= cap; on multi-TC chips prefer a tile
    that makes the number of batch grid steps a multiple of num_tc."""
    cap = max(1, min(batch, cap))
    divisors = [d for d in range(1, cap + 1) if batch % d == 0]
    if num_tc > 1 and batch >= num_tc:
        pref = [d for d in divisors if (batch // d) % num_tc == 0]
        if pref:
            return pref[-1]
    return divisors[-1]


def channel_attention_gate(x, w1, b1, w2, b2, *, tile_bytes=8 << 20):
    """Computes the (B, C) sigmoid channel gate with one Pallas kernel."""
    B, C, H, W = x.shape
    HW = H * W
    hidden = w1.shape[0]
    itemsize = jnp.dtype(x.dtype).itemsize

    LANE = 128
    MAX_SLICES = 32        # unroll cap for the in-kernel 128-lane slice loop

    if HW < LANE:
        lane_w = HW
        hw_t = HW
    else:
        lane_w = LANE
        n_total = HW // LANE                       # full 128-lane slices in HW
        n_slices = min(n_total, MAX_SLICES)
        # VMEM budget at bt=1; keep >= 4 slices (512 lanes => 2 KiB contiguous
        # DMA runs) whenever chunking is required.
        budget_slices = max(4, tile_bytes // max(C * LANE * itemsize, 1))
        n_slices = max(1, min(n_slices, budget_slices))
        hw_t = n_slices * LANE

    grid_hw = pl.cdiv(HW, hw_t)
    needs_mask = (HW % hw_t) != 0

    # Batch tile: fill the tile budget, keep the width-128 accumulators modest,
    # and (on multi-TC chips) keep batch grid steps a multiple of core count.
    num_tc = _num_tensorcores_per_chip()
    bt_cap = max(1, tile_bytes // max(C * hw_t * itemsize, 1))
    bt_cap = min(bt_cap, max(1, (2 << 20) // max(C * lane_w * 4, 1)))
    bt = _pick_batch_tile(B, bt_cap, num_tc)
    # TODO(synk): for B == 1 on 2-TensorCore chips (v7x) also split the HW
    # reduction across cores (leading parallel core axis + partials combine).

    grid = (B // bt, grid_hw)

    x_flat = x.reshape(B, C, HW)
    w1t = jnp.transpose(w1).astype(jnp.float32)        # (C, hidden)
    w2t = jnp.transpose(w2).astype(jnp.float32)        # (hidden, C)
    b1_row = b1.reshape(1, hidden).astype(jnp.float32)
    b2_row = b2.reshape(1, C).astype(jnp.float32)

    kernel = functools.partial(_channel_attention_gate_kernel,
                               int(HW), hw_t, lane_w, needs_mask)

    # VMEM budget: double-buffered x slab + weights + accumulators + slack,
    # capped below v7x's 64 MiB physical VMEM.
    x_block_bytes = bt * C * hw_t * itemsize
    weights_bytes = (C * hidden + hidden + hidden * C + C) * 4
    scratch_bytes = 2 * bt * C * lane_w * 4
    vmem_limit = 2 * x_block_bytes + 2 * weights_bytes + scratch_bytes + (4 << 20)
    vmem_limit = int(min(max(vmem_limit, 16 << 20), 48 << 20))

    gate = pl.pallas_call(
        kernel,
        out_shape=jax.ShapeDtypeStruct((B, C), x.dtype),
        grid_spec=pltpu.PrefetchScalarGridSpec(
            num_scalar_prefetch=0,
            grid=grid,
            in_specs=[
                pl.BlockSpec((bt, C, hw_t), lambda b, h: (b, 0, h)),   # x slab
                pl.BlockSpec((C, hidden), lambda b, h: (0, 0)),        # W1^T
                pl.BlockSpec((1, hidden), lambda b, h: (0, 0)),        # b1
                pl.BlockSpec((hidden, C), lambda b, h: (0, 0)),        # W2^T
                pl.BlockSpec((1, C), lambda b, h: (0, 0)),             # b2
            ],
            out_specs=pl.BlockSpec((bt, C), lambda b, h: (b, 0)),
            scratch_shapes=[
                pltpu.VMEM((bt, C, lane_w), jnp.float32),   # running sum
                pltpu.VMEM((bt, C, lane_w), jnp.float32),   # running max
            ],
        ),
        compiler_params=pltpu.CompilerParams(
            dimension_semantics=("parallel", "arbitrary"),
            vmem_limit_bytes=vmem_limit,
        ),
    )(x_flat, w1t, b1_row, w2t, b2_row)

    return gate                                   # (B, C)


def channel_attention(x, w1, b1, w2, b2):
    """Matches the PyTorch module output: the gate repeated over (H, W).

    Pooling + MLP + sigmoid runs in one Pallas kernel that writes only the
    (B, C) gate; the broadcast back to (B, C, H, W) is left to XLA so a real
    consumer (x * gate) can fuse it instead of paying HW x extra HBM writeback.
    """
    B, C, H, W = x.shape
    gate = channel_attention_gate(x, w1, b1, w2, b2)          # (B, C)
    return jnp.broadcast_to(gate[:, :, None, None], (B, C, H, W))


def reference(x, w1, b1, w2, b2):
    # Pure-JAX reference mirroring the PyTorch forward.
    B, C, H, W = x.shape
    avg_pool = jnp.mean(x, axis=(2, 3))   # (B, C)
    max_pool = jnp.max(x, axis=(2, 3))    # (B, C)

    def fc(v):  # torch Linear: v @ W.T + b
        h = jnp.maximum(v @ w1.T + b1, 0.0)
        return h @ w2.T + b2

    s = jax.nn.sigmoid(fc(avg_pool) + fc(max_pool))           # (B, C)
    return jnp.broadcast_to(s[:, :, None, None], (B, C, H, W))


if __name__ == "__main__":
    def run_case(key, B, C, H, W, reduction_ratio, dtype, tol):
        hidden = max(1, C // reduction_ratio)
        kx, k1, k2, k3, k4 = jax.random.split(key, 5)
        x = jax.random.normal(kx, (B, C, H, W), dtype=jnp.float32).astype(dtype)
        # nn.Linear(C, hidden): weight (hidden, C); nn.Linear(hidden, C): (C, hidden)
        w1 = jax.random.normal(k1, (hidden, C), dtype=jnp.float32) * 0.5
        b1 = jax.random.normal(k2, (hidden,), dtype=jnp.float32) * 0.1
        w2 = jax.random.normal(k3, (C, hidden), dtype=jnp.float32) * 0.5
        b2 = jax.random.normal(k4, (C,), dtype=jnp.float32) * 0.1

        out = channel_attention(x, w1, b1, w2, b2)
        jax.block_until_ready(out)

        ref = reference(x.astype(jnp.float32), w1, b1, w2, b2)
        assert out.shape == (B, C, H, W)
        assert jnp.allclose(out.astype(jnp.float32), ref, atol=tol, rtol=tol), \
            f"mismatch vs reference for case {(B, C, H, W, dtype)}"

    key = jax.random.PRNGKey(0)
    k0, k1, k2 = jax.random.split(key, 3)
    # Main case (matches the module's intended small-shape config).
    run_case(k0, 2, 4, 16, 16, 2, jnp.float32, 1e-5)
    # HW not a multiple of the 128-lane chunk -> exercises cdiv grid + masking.
    run_case(k1, 3, 8, 10, 20, 2, jnp.float32, 1e-5)
    # bf16 streaming path (cast to f32 per-slice inside the kernel).
    run_case(k2, 2, 4, 16, 16, 2, jnp.bfloat16, 2e-2)

    print("KERNEL_OK")
</pallas_src>

<mosaic_0001>
module attributes {stable_mosaic.version = 11 : i64} {
  func.func @_channel_attention_gate_kernel(%arg0: i32, %arg1: i32, %arg2: memref<2x4x256xf32, #tpu.memory_space<vmem>>, %arg3: memref<4x2xf32, #tpu.memory_space<vmem>>, %arg4: memref<1x2xf32, #tpu.memory_space<vmem>>, %arg5: memref<2x4xf32, #tpu.memory_space<vmem>>, %arg6: memref<1x4xf32, #tpu.memory_space<vmem>>, %arg7: memref<2x4xf32, #tpu.memory_space<vmem>>, %arg8: memref<2x4x128xf32, #tpu.memory_space<vmem>>, %arg9: memref<2x4x128xf32, #tpu.memory_space<vmem>>) attributes {dimension_semantics = [#tpu.dimension_semantics<parallel>, #tpu.dimension_semantics<arbitrary>], iteration_bounds = array<i64: 1, 1>, scalar_prefetch = 0 : i64, scratch_operands = 2 : i64, tpu.core_type = #tpu.core_type<tc>, window_params = [{transform_indices = @transform_0, window_bounds = array<i64: 2, 4, 256>}, {pipeline_mode = #tpu.pipeline_mode<synchronous>, transform_indices = @transform_1, window_bounds = array<i64: 4, 2>}, {pipeline_mode = #tpu.pipeline_mode<synchronous>, transform_indices = @transform_2, window_bounds = array<i64: 1, 2>}, {pipeline_mode = #tpu.pipeline_mode<synchronous>, transform_indices = @transform_3, window_bounds = array<i64: 2, 4>}, {pipeline_mode = #tpu.pipeline_mode<synchronous>, transform_indices = @transform_4, window_bounds = array<i64: 1, 4>}, {transform_indices = @transform_5, window_bounds = array<i64: 2, 4>}]} {
    %c0_i32 = arith.constant 0 : i32
    %0 = arith.cmpi eq, %arg1, %c0_i32 : i32
    %1 = arith.extui %0 : i1 to i32
    %c0_i32_0 = arith.constant 0 : i32
    %2 = arith.cmpi ne, %1, %c0_i32_0 : i32
    scf.if %2 {
      %cst = arith.constant 0.000000e+00 : f32
      %16 = vector.broadcast %cst : f32 to vector<2x4x128xf32>
      %c0_19 = arith.constant 0 : index
      %c0_20 = arith.constant 0 : index
      %c0_21 = arith.constant 0 : index
      %17 = vector.load %arg8[%c0_19, %c0_20, %c0_21] : memref<2x4x128xf32, #tpu.memory_space<vmem>>, vector<2x4x128xf32>
      tpu.vector_store %arg8[%c0_19, %c0_20, %c0_21], %16 {strides = array<i32>} : memref<2x4x128xf32, #tpu.memory_space<vmem>>, vector<2x4x128xf32>,
      %cst_22 = arith.constant 0xFF800000 : f32
      %18 = vector.broadcast %cst_22 : f32 to vector<2x4x128xf32>
      %c0_23 = arith.constant 0 : index
      %c0_24 = arith.constant 0 : index
      %c0_25 = arith.constant 0 : index
      %19 = vector.load %arg9[%c0_23, %c0_24, %c0_25] : memref<2x4x128xf32, #tpu.memory_space<vmem>>, vector<2x4x128xf32>
      tpu.vector_store %arg9[%c0_23, %c0_24, %c0_25], %18 {strides = array<i32>} : memref<2x4x128xf32, #tpu.memory_space<vmem>>, vector<2x4x128xf32>,
    } else {
    }
    %c0 = arith.constant 0 : index
    %c0_1 = arith.constant 0 : index
    %c0_2 = arith.constant 0 : index
    %3 = vector.load %arg2[%c0, %c0_1, %c0_2] : memref<2x4x256xf32, #tpu.memory_space<vmem>>, vector<2x4x128xf32>
    %c0_3 = arith.constant 0 : index
    %c0_4 = arith.constant 0 : index
    %c128 = arith.constant 128 : index
    %4 = vector.load %arg2[%c0_3, %c0_4, %c128] : memref<2x4x256xf32, #tpu.memory_space<vmem>>, vector<2x4x128xf32>
    %5 = arith.addf %3, %4 : vector<2x4x128xf32>
    %6 = arith.maximumf %3, %4 : vector<2x4x128xf32>
    %c0_5 = arith.constant 0 : index
    %c0_6 = arith.constant 0 : index
    %c0_7 = arith.constant 0 : index
    %7 = vector.load %arg8[%c0_5, %c0_6, %c0_7] : memref<2x4x128xf32, #tpu.memory_space<vmem>>, vector<2x4x128xf32>
    %8 = arith.addf %7, %5 : vector<2x4x128xf32>
    %c0_8 = arith.constant 0 : index
    %c0_9 = arith.constant 0 : index
    %c0_10 = arith.constant 0 : index
    %9 = vector.load %arg8[%c0_8, %c0_9, %c0_10] : memref<2x4x128xf32, #tpu.memory_space<vmem>>, vector<2x4x128xf32>
    tpu.vector_store %arg8[%c0_8, %c0_9, %c0_10], %8 {strides = array<i32>} : memref<2x4x128xf32, #tpu.memory_space<vmem>>, vector<2x4x128xf32>,
    %c0_11 = arith.constant 0 : index
    %c0_12 = arith.constant 0 : index
    %c0_13 = arith.constant 0 : index
    %10 = vector.load %arg9[%c0_11, %c0_12, %c0_13] : memref<2x4x128xf32, #tpu.memory_space<vmem>>, vector<2x4x128xf32>
    %11 = arith.maximumf %10, %6 : vector<2x4x128xf32>
    %c0_14 = arith.constant 0 : index
    %c0_15 = arith.constant 0 : index
    %c0_16 = arith.constant 0 : index
    %12 = vector.load %arg9[%c0_14, %c0_15, %c0_16] : memref<2x4x128xf32, #tpu.memory_space<vmem>>, vector<2x4x128xf32>
    tpu.vector_store %arg9[%c0_14, %c0_15, %c0_16], %11 {strides = array<i32>} : memref<2x4x128xf32, #tpu.memory_space<vmem>>, vector<2x4x128xf32>,
    %c0_i32_17 = arith.constant 0 : i32
    %13 = arith.cmpi eq, %arg1, %c0_i32_17 : i32
    %14 = arith.extui %13 : i1 to i32
    %c0_i32_18 = arith.constant 0 : i32
    %15 = arith.cmpi ne, %14, %c0_i32_18 : i32
    scf.if %15 {
      %c0_19 = arith.constant 0 : index
      %c0_20 = arith.constant 0 : index
      %c0_21 = arith.constant 0 : index
      %16 = vector.load %arg8[%c0_19, %c0_20, %c0_21] : memref<2x4x128xf32, #tpu.memory_space<vmem>>, vector<2x4x128xf32>
      %cst = arith.constant dense<0.000000e+00> : vector<2x4xf32>
      %17 = vector.multi_reduction <add>, %16, %cst [2] : vector<2x4x128xf32> to vector<2x4xf32>
      %cst_22 = arith.constant 3.906250e-03 : f32
      %18 = vector.broadcast %cst_22 : f32 to vector<2x4xf32>
      %19 = arith.mulf %17, %18 : vector<2x4xf32>
      %c0_23 = arith.constant 0 : index
      %c0_24 = arith.constant 0 : index
      %c0_25 = arith.constant 0 : index
      %20 = vector.load %arg9[%c0_23, %c0_24, %c0_25] : memref<2x4x128xf32, #tpu.memory_space<vmem>>, vector<2x4x128xf32>
      %cst_26 = arith.constant dense<0xFF800000> : vector<2x4xf32>
      %21 = vector.multi_reduction <maximumf>, %20, %cst_26 [2] : vector<2x4x128xf32> to vector<2x4xf32>
      %22 = tpu.concatenate %19, %21 in 0 : vector<2x4xf32>, vector<2x4xf32> -> vector<4x4xf32>
      %c0_27 = arith.constant 0 : index
      %c0_28 = arith.constant 0 : index
      %23 = vector.load %arg3[%c0_27, %c0_28] : memref<4x2xf32, #tpu.memory_space<vmem>>, vector<4x2xf32>
      %cst_29 = arith.constant dense<0.000000e+00> : vector<4x2xf32>
      %24 = tpu.matmul %22, %23, %cst_29 {dimension_numbers = #tpu.dot_dimension_numbers<[1], [0], [0], [1], [0, 0, 1, 1], [], []>} : vector<4x4xf32>, vector<4x2xf32>, vector<4x2xf32> -> vector<4x2xf32>
      %c0_30 = arith.constant 0 : index
      %c0_31 = arith.constant 0 : index
      %25 = vector.load %arg4[%c0_30, %c0_31] : memref<1x2xf32, #tpu.memory_space<vmem>>, vector<1x2xf32>
      %26 = vector.broadcast %25 : vector<1x2xf32> to vector<4x2xf32>
      %27 = arith.addf %24, %26 : vector<4x2xf32>
      %cst_32 = arith.constant 0.000000e+00 : f32
      %28 = vector.broadcast %cst_32 : f32 to vector<4x2xf32>
      %29 = arith.maximumf %27, %28 : vector<4x2xf32>
      %c0_33 = arith.constant 0 : index
      %c0_34 = arith.constant 0 : index
      %30 = vector.load %arg5[%c0_33, %c0_34] : memref<2x4xf32, #tpu.memory_space<vmem>>, vector<2x4xf32>
      %cst_35 = arith.constant dense<0.000000e+00> : vector<4x4xf32>
      %31 = tpu.matmul %29, %30, %cst_35 {dimension_numbers = #tpu.dot_dimension_numbers<[1], [0], [0], [1], [0, 0, 1, 1], [], []>} : vector<4x2xf32>, vector<2x4xf32>, vector<4x4xf32> -> vector<4x4xf32>
      %c0_36 = arith.constant 0 : index
      %c0_37 = arith.constant 0 : index
      %32 = vector.load %arg6[%c0_36, %c0_37] : memref<1x4xf32, #tpu.memory_space<vmem>>, vector<1x4xf32>
      %33 = vector.broadcast %32 : vector<1x4xf32> to vector<4x4xf32>
      %34 = arith.addf %31, %33 : vector<4x4xf32>
      %35 = vector.extract_strided_slice %34 {offsets = [0, 0], sizes = [2, 4], strides = [1, 1]} : vector<4x4xf32> to vector<2x4xf32>
      %36 = vector.extract_strided_slice %34 {offsets = [2, 0], sizes = [2, 4], strides = [1, 1]} : vector<4x4xf32> to vector<2x4xf32>
      %37 = arith.addf %35, %36 : vector<2x4xf32>
      %38 = arith.negf %37 : vector<2x4xf32>
      %39 = math.exp %38 : vector<2x4xf32>
      %cst_38 = arith.constant 1.000000e+00 : f32
      %40 = vector.broadcast %cst_38 : f32 to vector<2x4xf32>
      %41 = arith.addf %40, %39 : vector<2x4xf32>
      %42 = arith.divf %40, %41 : vector<2x4xf32>
      %c0_39 = arith.constant 0 : index
      %c0_40 = arith.constant 0 : index
      %43 = vector.load %arg7[%c0_39, %c0_40] : memref<2x4xf32, #tpu.memory_space<vmem>>, vector<2x4xf32>
      tpu.vector_store %arg7[%c0_39, %c0_40], %42 {strides = array<i32>} : memref<2x4xf32, #tpu.memory_space<vmem>>, vector<2x4xf32>,
    } else {
    }
    return
  }
  func.func @transform_0(%arg0: i32, %arg1: i32) -> (i32, i32, i32) {
    %c0_i32 = arith.constant 0 : i32
    %c0_i32_0 = arith.constant 0 : i32
    return %arg0, %c0_i32, %arg1 : i32, i32, i32
  }
  func.func @transform_1(%arg0: i32, %arg1: i32) -> (i32, i32) {
    %c0_i32 = arith.constant 0 : i32
    %c0_i32_0 = arith.constant 0 : i32
    %c0_i32_1 = arith.constant 0 : i32
    return %c0_i32, %c0_i32_0 : i32, i32
  }
  func.func @transform_2(%arg0: i32, %arg1: i32) -> (i32, i32) {
    %c0_i32 = arith.constant 0 : i32
    %c0_i32_0 = arith.constant 0 : i32
    %c0_i32_1 = arith.constant 0 : i32
    return %c0_i32, %c0_i32_0 : i32, i32
  }
  func.func @transform_3(%arg0: i32, %arg1: i32) -> (i32, i32) {
    %c0_i32 = arith.constant 0 : i32
    %c0_i32_0 = arith.constant 0 : i32
    %c0_i32_1 = arith.constant 0 : i32
    return %c0_i32, %c0_i32_0 : i32, i32
  }
  func.func @transform_4(%arg0: i32, %arg1: i32) -> (i32, i32) {
    %c0_i32 = arith.constant 0 : i32
    %c0_i32_0 = arith.constant 0 : i32
    %c0_i32_1 = arith.constant 0 : i32
    return %c0_i32, %c0_i32_0 : i32, i32
  }
  func.func @transform_5(%arg0: i32, %arg1: i32) -> (i32, i32) {
    %c0_i32 = arith.constant 0 : i32
    %c0_i32_0 = arith.constant 0 : i32
    return %arg0, %c0_i32 : i32, i32
  }
}

</mosaic_0001>

<llo_original>
// kernel: tpu_custom_call.1
$region0: #{tpu_custom_call.1}
  #allocation0 [shape = 'u32[]', space=smem, size = 0x4, offset = 0x4, fixed_abs, tag = 'smem constant byte address 0x4 - core index']
  #allocation1 [shape = 'u32[144,128]{1,0:T(1,128)}', space=vmem, size = 0x12000, scoped, tag = 'internal scratch']
  #allocation2 [shape = 'f32[2,4,128]{2,1,0:T(4,128)}', space=vmem, size = 0x1000, scoped, tag = 'scratch operand']
  #allocation3 [shape = 'f32[2,4,128]{2,1,0:T(4,128)}', space=vmem, size = 0x1000, scoped, tag = 'scratch operand']
  %s0 = inlined_call_operand.hbm [shape: f32[2,4,256], index: 0, kind: input, shape index: {}]
  %s1 = inlined_call_operand.vmem [shape: f32[4,2], index: 1, kind: input, shape index: {}]
  %s2 = inlined_call_operand.vmem [shape: f32[1,2], index: 2, kind: input, shape index: {}]
  %s3 = inlined_call_operand.vmem [shape: f32[2,4], index: 3, kind: input, shape index: {}]
  %s4 = inlined_call_operand.vmem [shape: f32[1,4], index: 4, kind: input, shape index: {}]
  %s5 = inlined_call_operand.hbm [shape: f32[2,4], index: 5, kind: output, shape index: {}]
  %s6 = sld [smem:[#allocation0]]
  $region42: #{tpu_custom_call.1} parent=0
    _
  %s8 = ssub.s32 1, %s6
  %s9 = scalar_select 0, %s8, %s6
  $region1: #{tpu_custom_call.1} parent=0
    #allocation4 [shape = 'u8[8192]{0}', space=vmem, size = 0x2000, scoped, tag = 'input window, operand 0, single buffered']
    #allocation5 [shape = 's32[1]{0}', space=sflag, size = 0x4, scoped, tag = 'scoped memory for tpu_custom_call.1']
    #allocation6 [shape = 's32[1]{0}', space=sflag, size = 0x4, scoped, tag = 'scoped memory for tpu_custom_call.1']
    #allocation7 [shape = 'u8[1024]{0}', space=vmem, size = 0x400, scoped, tag = 'output window, operand 0, single buffered']
    %10 = vsyncpa [#allocation5], 0
    %11 = vsyncpa [#allocation6], 0
    // Predicated region
    $region2: #{tpu_custom_call.1} parent=1 // pred_check
      _
    $region3: #{tpu_custom_call.1} parent=1 // pred_check_branch
      %13 = sbr.rel (0) target = $region5
    $region4: #{tpu_custom_call.1} parent=1 // pred_region
      %s15 = ssub.s32 256, 256
      %16 = vsyncadd [#allocation5], %s15
      %s17 = sshll.u32 [#allocation4], 4
      %s18 = int_to_ptr.vmem [resolvable:$true] %s17
      %23 = dma.hbm_to_vmem [thread:$0]  %s0, 256, %s18, [#allocation5], 128, 128, 8
    $region5: #{tpu_custom_call.1} parent=1 // pred_fallthru
      _
    // Predicated region
    $region6: #{tpu_custom_call.1} parent=1 // pred_check
      _
    $region7: #{tpu_custom_call.1} parent=1 // pred_check_branch
      %25 = sbr.rel (0) target = $region9
    $region8: #{tpu_custom_call.1} parent=1 // pred_region
      _
    $region9: #{tpu_custom_call.1} parent=1 // pred_fallthru
      _
    // Predicated region
    $region10: #{tpu_custom_call.1} parent=1 // pred_check
      _
    $region11: #{tpu_custom_call.1} parent=1 // pred_check_branch
      %27 = sbr.rel (0) target = $region13
    $region12: #{tpu_custom_call.1} parent=1 // pred_region
      _
    $region13: #{tpu_custom_call.1} parent=1 // pred_fallthru
      _
    // Predicated region
    $region14: #{tpu_custom_call.1} parent=1 // pred_check
      _
    $region15: #{tpu_custom_call.1} parent=1 // pred_check_branch
      %29 = sbr.rel (0) target = $region17
    $region16: #{tpu_custom_call.1} parent=1 // pred_region
      _
    $region17: #{tpu_custom_call.1} parent=1 // pred_fallthru
      _
    // Predicated region
    $region18: #{tpu_custom_call.1} parent=1 // pred_check
      _
    $region19: #{tpu_custom_call.1} parent=1 // pred_check_branch
      %31 = sbr.rel (0) target = $region21
    $region20: #{tpu_custom_call.1} parent=1 // pred_region
      _
    $region21: #{tpu_custom_call.1} parent=1 // pred_fallthru
      _
    // Predicated region
    $region22: #{tpu_custom_call.1} parent=1 // pred_check
      _
    $region23: #{tpu_custom_call.1} parent=1 // pred_check_branch
      %33 = sbr.rel (0) target = $region25
    $region24: #{tpu_custom_call.1} parent=1 // pred_region
      %34 = dma.done [#allocation5], 256
    $region25: #{tpu_custom_call.1} parent=1 // pred_fallthru
      _
    %p35 = scmp.eq.s32.totalorder 0, 0
    // Predicated region
    $region26: #{tpu_custom_call.1} parent=1 // pred_check
      %p36 = pneg %p35
    $region27: #{tpu_custom_call.1} parent=1 // pred_check_branch
      %38 = sbr.rel (%p36) target = $region29
    $region28: #{tpu_custom_call.1} parent=1 // pred_region
      %39 = vst [vmem:[#allocation2] sm:$0xf] 0.0
      %40 = vst [vmem:[#allocation2 + $0x4] sm:$0xf] 0.0
      %41 = vst [vmem:[#allocation3] sm:$0xf] -inf
      %42 = vst [vmem:[#allocation3 + $0x4] sm:$0xf] -inf
    $region29: #{tpu_custom_call.1} parent=1 // pred_fallthru
      _
    %v43 = vld [vmem:[#allocation4] sm:$0xf]
    %v44 = vld [vmem:[#allocation4 + $0x8] sm:$0xf]
    %v45 = vld [vmem:[#allocation4 + $0x4] sm:$0xf]
    %v46 = vld [vmem:[#allocation4 + $0xc] sm:$0xf]
    %v47 = vadd.f32 %v43, %v45
    %v48 = vadd.f32 %v44, %v46
    %v49 = vmax.f32 %v43, %v45
    %v50 = vmax.f32 %v44, %v46
    %v51 = vld [vmem:[#allocation2] sm:$0xf]
    %v52 = vld [vmem:[#allocation2 + $0x4] sm:$0xf]
    %v53 = vadd.f32 %v51, %v47
    %v54 = vadd.f32 %v52, %v48
    %55 = vst [vmem:[#allocation2] sm:$0xf] %v53
    %56 = vst [vmem:[#allocation2 + $0x4] sm:$0xf] %v54
    %v57 = vld [vmem:[#allocation3] sm:$0xf]
    %v58 = vld [vmem:[#allocation3 + $0x4] sm:$0xf]
    %v59 = vmax.f32 %v57, %v49
    %v60 = vmax.f32 %v58, %v50
    %61 = vst [vmem:[#allocation3] sm:$0xf] %v59
    %62 = vst [vmem:[#allocation3 + $0x4] sm:$0xf] %v60
    // Predicated region
    $region30: #{tpu_custom_call.1} parent=1 // pred_check
      %p63 = pneg %p35
    $region31: #{tpu_custom_call.1} parent=1 // pred_check_branch
      %65 = sbr.rel (%p63) target = $region33
    $region32: #{tpu_custom_call.1} parent=1 // pred_region
      %v66 = vld [vmem:[#allocation2] sm:$0xf]
      %v67 = vld [vmem:[#allocation2 + $0x4] sm:$0xf]
      %vm68 = vcmask 1043456
      %v69 = vsel %vm68, %v66, 0.0
      %70 = vadd.xlane.f32.xlu0 %v69
      %v71 = vpop.xlane.xlu0 %70
      %v72 = vsel %vm68, %v67, 0.0
      %73 = vadd.xlane.f32.xlu0 %v72
      %v74 = vpop.xlane.xlu0 %73
      %v75 = vmul.f32 %v71, 0.00390625
      %v76 = vmul.f32 %v74, 0.00390625
      %v77 = vld [vmem:[#allocation3] sm:$0xf]
      %v78 = vld [vmem:[#allocation3 + $0x4] sm:$0xf]
      %v79 = vsel %vm68, %v77, -inf
      %80 = vmax.xlane.f32.xlu0 %v79
      %v81 = vpop.xlane.xlu0 %80
      %v82 = vsel %vm68, %v78, -inf
      %83 = vmax.xlane.f32.xlu0 %v82
      %v84 = vpop.xlane.xlu0 %83
      %v87 = vlaneseq
      %v88 = vand.u32 %v87, 127
      %v89 = vlaneseq
      %v90 = vshrl.u32 %v89, 7
      %v91 = vsub.s32 %v88, %v90
      %v92 = vrot.slane %v75, %v91
      %v93 = vlaneseq
      %v94 = vshrl.u32 %v93, 7
      %v95 = vsub.s32 %v88, %v94
      %v96 = vrot.slane %v76, %v95
      %vm97 = vcmask 1041409
      %v98 = vsel %vm97, %v96, %v92
      %v102 = vlaneseq
      %v103 = vshrl.u32 %v102, 7
      %v104 = vsub.s32 %v88, %v103
      %v105 = vrot.slane %v81, %v104
      %v106 = vlaneseq
      %v107 = vshrl.u32 %v106, 7
      %v108 = vsub.s32 %v88, %v107
      %v109 = vrot.slane %v84, %v108
      %vm110 = vcmask 1043459
      %v111 = vsel %vm110, %v109, %v105
      %vm113 = vcmask 1041408
      %v114 = vsel %vm113, %v98, %v111
      %v115 = vld [vmem:[%s1] sm:$0xf]
      %v116 = vld [vmem:[%s2] sm:$0x1]
      %v118 = vlaneseq
      %v119 = vshrl.u32 %v118, 7
      %v120 = vsub.s32 0, %v119
      %v121 = vrot.slane %v116, %v120
      %vm123 = vcmask 31744
      %v125 = vsel %vm123, %v114, 0
      %v128 = vsel %vm68, %v115, 0
      %130 = vmatprep.subr.mxu0 0.0
      %131 = vmatpush1.msra.mxu0 0.0
      %132 = vmatprep.subr.mxu0 0.0
      %133 = vmatpush1.msra.mxu0 0.0
      %134 = vmatprep.subr.mxu0 0.0
      %135 = vmatpush1.msra.mxu0 0.0
      %136 = vmatprep.subr.mxu0 0.0
      %137 = vmatpush1.msra.mxu0 0.0
      %138 = vmatprep.subr.mxu0 0.0
      %139 = vmatpush1.msra.mxu0 0.0
      %140 = vmatprep.subr.mxu0 0.0
      %141 = vmatpush1.msra.mxu0 0.0
      %142 = vmatprep.subr.mxu0 0.0
      %143 = vmatpush1.msra.mxu0 0.0
      %144 = vmatprep.subr.mxu0 0.0
      %145 = vmatpush1.msra.mxu0 0.0
      %146 = vmatprep.subr.mxu0 0.0
      %147 = vmatpush1.msra.mxu0 0.0
      %148 = vmatprep.subr.mxu0 0.0
      %149 = vmatpush1.msra.mxu0 0.0
      %150 = vmatprep.subr.mxu0 0.0
      %151 = vmatpush1.msra.mxu0 0.0
      %152 = vmatprep.subr.mxu0 0.0
      %153 = vmatpush1.msra.mxu0 0.0
      %154 = vmatprep.subr.mxu0 0.0
      %155 = vmatpush1.msra.mxu0 0.0
      %156 = vmatprep.subr.mxu0 0.0
      %157 = vmatpush1.msra.mxu0 0.0
      %158 = vmatprep.subr.mxu0 0.0
      %159 = vmatpush1.msra.mxu0 0.0
      %160 = vmatprep.subr.mxu0 0.0
      %161 = vmatpush1.msra.mxu0 %v128
      %162 = vmatprep.subr.mxu0 0.0
      %163 = vmatpush2.msra.mxu0 0.0
      %164 = vmatprep.subr.mxu0 0.0
      %165 = vmatpush2.msra.mxu0 0.0
      %166 = vmatprep.subr.mxu0 0.0
      %167 = vmatpush2.msra.mxu0 0.0
      %168 = vmatprep.subr.mxu0 0.0
      %169 = vmatpush2.msra.mxu0 0.0
      %170 = vmatprep.subr.mxu0 0.0
      %171 = vmatpush2.msra.mxu0 0.0
      %172 = vmatprep.subr.mxu0 0.0
      %173 = vmatpush2.msra.mxu0 0.0
      %174 = vmatprep.subr.mxu0 0.0
      %175 = vmatpush2.msra.mxu0 0.0
      %176 = vmatprep.subr.mxu0 0.0
      %177 = vmatpush2.msra.mxu0 0.0
      %178 = vmatprep.subr.mxu0 0.0
      %179 = vmatpush2.msra.mxu0 0.0
      %180 = vmatprep.subr.mxu0 0.0
      %181 = vmatpush2.msra.mxu0 0.0
      %182 = vmatprep.subr.mxu0 0.0
      %183 = vmatpush2.msra.mxu0 0.0
      %184 = vmatprep.subr.mxu0 0.0
      %185 = vmatpush2.msra.mxu0 0.0
      %186 = vmatprep.subr.mxu0 0.0
      %187 = vmatpush2.msra.mxu0 0.0
      %188 = vmatprep.subr.mxu0 0.0
      %189 = vmatpush2.msra.mxu0 0.0
      %190 = vmatprep.subr.mxu0 0.0
      %191 = vmatpush2.msra.mxu0 0.0
      %192 = vmatprep.subr.mxu0 0.0
      %193 = vmatpush2.msra.mxu0 0.0
      %194 = vmatprep.mubr.f32.mxu0 0.0
      %195 = vmatmul.mubr.f32.gmra.mxu0 %v125
      %v196 = vpop.f32.mrf.mxu0
      %v197 = vadd.f32 %v121, %v196
      %v198 = vpop.f32.mrf.mxu0
      %199 = vdwg.mxu0
      %v200 = vmax.f32 %v197, 0.0
      %v201 = vld [vmem:[%s3] sm:$0x3]
      %v202 = vld [vmem:[%s4] sm:$0x1]
      %v204 = vlaneseq
      %v205 = vshrl.u32 %v204, 7
      %v206 = vsub.s32 0, %v205
      %v207 = vrot.slane %v202, %v206
      %vm209 = vcmask 15360
      %v211 = vsel %vm209, %v200, 0
      %v214 = vsel %vm113, %v201, 0
      %216 = vmatprep.subr.mxu0 0.0
      %217 = vmatpush1.msra.mxu0 0.0
      %218 = vmatprep.subr.mxu0 0.0
      %219 = vmatpush1.msra.mxu0 0.0
      %220 = vmatprep.subr.mxu0 0.0
      %221 = vmatpush1.msra.mxu0 0.0
      %222 = vmatprep.subr.mxu0 0.0
      %223 = vmatpush1.msra.mxu0 0.0
      %224 = vmatprep.subr.mxu0 0.0
      %225 = vmatpush1.msra.mxu0 0.0
      %226 = vmatprep.subr.mxu0 0.0
      %227 = vmatpush1.msra.mxu0 0.0
      %228 = vmatprep.subr.mxu0 0.0
      %229 = vmatpush1.msra.mxu0 0.0
      %230 = vmatprep.subr.mxu0 0.0
      %231 = vmatpush1.msra.mxu0 0.0
      %232 = vmatprep.subr.mxu0 0.0
      %233 = vmatpush1.msra.mxu0 0.0
      %234 = vmatprep.subr.mxu0 0.0
      %235 = vmatpush1.msra.mxu0 0.0
      %236 = vmatprep.subr.mxu0 0.0
      %237 = vmatpush1.msra.mxu0 0.0
      %238 = vmatprep.subr.mxu0 0.0
      %239 = vmatpush1.msra.mxu0 0.0
      %240 = vmatprep.subr.mxu0 0.0
      %241 = vmatpush1.msra.mxu0 0.0
      %242 = vmatprep.subr.mxu0 0.0
      %243 = vmatpush1.msra.mxu0 0.0
      %244 = vmatprep.subr.mxu0 0.0
      %245 = vmatpush1.msra.mxu0 0.0
      %246 = vmatprep.subr.mxu0 0.0
      %247 = vmatpush1.msra.mxu0 %v214
      %248 = vmatprep.subr.mxu0 0.0
      %249 = vmatpush2.msra.mxu0 0.0
      %250 = vmatprep.subr.mxu0 0.0
      %251 = vmatpush2.msra.mxu0 0.0
      %252 = vmatprep.subr.mxu0 0.0
      %253 = vmatpush2.msra.mxu0 0.0
      %254 = vmatprep.subr.mxu0 0.0
      %255 = vmatpush2.msra.mxu0 0.0
      %256 = vmatprep.subr.mxu0 0.0
      %257 = vmatpush2.msra.mxu0 0.0
      %258 = vmatprep.subr.mxu0 0.0
      %259 = vmatpush2.msra.mxu0 0.0
      %260 = vmatprep.subr.mxu0 0.0
      %261 = vmatpush2.msra.mxu0 0.0
      %262 = vmatprep.subr.mxu0 0.0
      %263 = vmatpush2.msra.mxu0 0.0
      %264 = vmatprep.subr.mxu0 0.0
      %265 = vmatpush2.msra.mxu0 0.0
      %266 = vmatprep.subr.mxu0 0.0
      %267 = vmatpush2.msra.mxu0 0.0
      %268 = vmatprep.subr.mxu0 0.0
      %269 = vmatpush2.msra.mxu0 0.0
      %270 = vmatprep.subr.mxu0 0.0
      %271 = vmatpush2.msra.mxu0 0.0
      %272 = vmatprep.subr.mxu0 0.0
      %273 = vmatpush2.msra.mxu0 0.0
      %274 = vmatprep.subr.mxu0 0.0
      %275 = vmatpush2.msra.mxu0 0.0
      %276 = vmatprep.subr.mxu0 0.0
      %277 = vmatpush2.msra.mxu0 0.0
      %278 = vmatprep.subr.mxu0 0.0
      %279 = vmatpush2.msra.mxu0 0.0
      %280 = vmatprep.mubr.f32.mxu0 0.0
      %281 = vmatmul.mubr.f32.gmra.mxu0 %v211
      %v282 = vpop.f32.mrf.mxu0
      %v283 = vadd.f32 %v207, %v282
      %v284 = vpop.f32.mrf.mxu0
      %285 = vdwg.mxu0
      %v287 = vrot.slane %v283, 2
      %v289 = vadd.f32 %v283, %v287
      %v290 = vxor.u32 %v289, 2147483648
      %v291 = vmul.f32 %v290, 1.442695
      %v292 = vpow.pop %v291
      %v293 = vadd.f32 %v292, 1.0
      %v294 = vrcp.pop %v293
      %v295 = vmul.f32 1.0, %v294
      %vm296 = vcmask 25600
      %297 = vst.msk [vmem:[#allocation7] sm:$0x3] %vm296, %v295
    $region33: #{tpu_custom_call.1} parent=1 // pred_fallthru
      _
    // Predicated region
    $region34: #{tpu_custom_call.1} parent=1 // pred_check
      _
    $region35: #{tpu_custom_call.1} parent=1 // pred_check_branch
      %299 = sbr.rel (0) target = $region37
    $region36: #{tpu_custom_call.1} parent=1 // pred_region
      %s301 = ssub.s32 32, 32
      %302 = vsyncadd [#allocation6], %s301
      %s304 = sshll.u32 [#allocation7], 4
      %s305 = int_to_ptr.vmem [resolvable:$true] %s304
      %307 = dma.vmem_to_hbm [thread:$0]  %s305, 32, %s5, [#allocation6]
    $region37: #{tpu_custom_call.1} parent=1 // pred_fallthru
      _
    // Predicated region
    $region38: #{tpu_custom_call.1} parent=1 // pred_check
      _
    $region39: #{tpu_custom_call.1} parent=1 // pred_check_branch
      %309 = sbr.rel (0) target = $region41
    $region40: #{tpu_custom_call.1} parent=1 // pred_region
      %310 = dma.done [#allocation6], 32
    $region41: #{tpu_custom_call.1} parent=1 // pred_fallthru
      _
    %311 = vsyncpa [#allocation5], 1
    %312 = vsyncpa [#allocation6], 1

</llo_original>
